<compile_context>
chip_gen: v7x
topology: tpu7x:2x2x1
jax: 0.10.0
libtpu: 0.0.40
codegen_flags: <defaults>
</compile_context>

<pallas_src>
import functools

import jax
import jax.numpy as jnp
from jax import lax
from jax.experimental import pallas as pl
from jax.experimental.pallas import tpu as pltpu

LANE = 128   # pad hidden / feature dims to one full lane width
SUB = 8      # sublane granularity for the batch dim


def _decoder_attn_kernel(L, S, bat_ref, w_ref, b_ref, out_ref):
    """Fused DecoderAttn forward (single invocation, everything in VMEM).

    bat_ref : (1 + L + 2*S, Bp, LANE) stacked per-batch operands:
                [0]               h0   initial hidden (encoder last state)
                [1 .. L]          pre  = x_t @ Wih^T + (b_ih + b_hh), time-major
                [1+L .. L+S]      pk   projected keys (keys @ Wk^T + b_k)
                [1+L+S .. L+2S]   v    values (= raw encoder hidden states)
    w_ref   : (4, LANE, LANE) stacked weights (zero padded):
                [0] Whh^T   [1] Wq^T / sqrt(d_k)
                [2] Wr[:, :H]^T (context half)   [3] Wr[:, H:]^T (query half)
    b_ref   : (2, 1, LANE) stacked biases: [0] b_q / sqrt(d_k), [1] b_r
    out_ref : (Bp, LANE) regression output (lanes >= n_features are 0)
    """
    whh = w_ref[0]                       # hoist recurrent weight out of loop

    # --- serial RNN recurrence: one MXU matmul + EUP tanh per step ----------
    h = bat_ref[0]
    for t in range(L):                   # L is trace-time static -> unrolled,
        h = jnp.tanh(bat_ref[1 + t]      #   all Ref indices are static views
                     + jnp.dot(h, whh, preferred_element_type=jnp.float32))
    query = h                                                   # (Bp, LANE)

    # --- attention over the S encoder positions ------------------------------
    # 1/sqrt(d_k) is already folded into w_ref[1] / b_ref[0] by the wrapper.
    pq = jnp.dot(query, w_ref[1],
                 preferred_element_type=jnp.float32) + b_ref[0]

    scores = [jnp.sum(pq * bat_ref[1 + L + s], axis=-1, keepdims=True)
              for s in range(S)]                                # S x (Bp, 1)

    m = scores[0]
    for s in range(1, S):
        m = jnp.maximum(m, scores[s])
    exps = [jnp.exp(sc - m) for sc in scores]
    denom = exps[0]
    for s in range(1, S):
        denom = denom + exps[s]
    inv = 1.0 / denom                    # exact softmax (keeps 1e-5 tolerance)

    context = (exps[0] * inv) * bat_ref[1 + L + S]
    for s in range(1, S):
        context = context + (exps[s] * inv) * bat_ref[1 + L + S + s]

    # --- regression head on [context, query] ---------------------------------
    out = (jnp.dot(context, w_ref[2], preferred_element_type=jnp.float32)
           + jnp.dot(query, w_ref[3], preferred_element_type=jnp.float32)
           + b_ref[1])
    out_ref[...] = out.astype(out_ref.dtype)


@jax.jit
def decoder_attn_forward(X, hidden_seq, p):
    """X: (B, L, F) decoder input; hidden_seq: (B, S, H) encoder hidden states.

    Equivalent to DecoderAttn.init_hidden(hidden_seq) + DecoderAttn.forward(X).
    Returns (B, 1, F).
    """
    dt = jnp.float32
    B, L, F = X.shape
    S, H = hidden_seq.shape[1], hidden_seq.shape[2]
    Bp = ((B + SUB - 1) // SUB) * SUB          # sublane-pad the batch
    scale = 1.0 / float(H) ** 0.5              # d_k = hidden_dim

    # ---- init_hidden: key projection, values, initial hidden (parallel, XLA)
    keys = hidden_seq.astype(dt)                               # values = keys
    proj_keys = keys @ p["w_k"].T + p["b_k"]                   # (B, S, H)
    h0 = keys[:, -1, :]                                        # (B, H)

    # ---- hoisted parallel input projection -----------------------------------
    pre = X.astype(dt) @ p["w_ih"].T + (p["b_ih"] + p["b_hh"])  # (B, L, H)

    def pad_bl(a):  # (..., B, H) -> (..., Bp, LANE), zero padded
        pads = [(0, 0)] * (a.ndim - 2) + [(0, Bp - B), (0, LANE - H)]
        return jnp.pad(a, pads)

    bat = jnp.concatenate([
        pad_bl(h0)[None],                                      # (1, Bp, LANE)
        pad_bl(jnp.transpose(pre, (1, 0, 2))),                 # (L, Bp, LANE)
        pad_bl(jnp.transpose(proj_keys, (1, 0, 2))),           # (S, Bp, LANE)
        pad_bl(jnp.transpose(keys, (1, 0, 2))),                # (S, Bp, LANE)
    ], axis=0)                                                 # (1+L+2S, Bp, LANE)

    def pad_w(w):  # (rows, cols) -> (LANE, LANE), zero padded
        return (jnp.zeros((LANE, LANE), dt)
                .at[:w.shape[0], :w.shape[1]].set(w.astype(dt)))

    w_stack = jnp.stack([
        pad_w(p["w_hh"].T),                 # Whh^T
        pad_w(p["w_q"].T * scale),          # Wq^T, score scale folded in
        pad_w(p["w_r"][:, :H].T),           # regression weight, context half
        pad_w(p["w_r"][:, H:].T),           # regression weight, query half
    ], axis=0)                                                 # (4, LANE, LANE)

    def pad_b(b):  # (n,) -> (1, LANE), zero padded
        return jnp.zeros((1, LANE), dt).at[0, :b.shape[0]].set(b.astype(dt))

    b_stack = jnp.stack([pad_b(p["b_q"] * scale),
                         pad_b(p["b_r"])], axis=0)             # (2, 1, LANE)

    kernel = functools.partial(_decoder_attn_kernel, L, S)

    # Everything fits trivially in VMEM at these sizes; for very long decoder
    # sequences the `pre` stack would instead be time-chunked with a grid axis.
    out_p = pl.pallas_call(
        kernel,
        out_shape=jax.ShapeDtypeStruct((Bp, LANE), dt),
        in_specs=[pl.BlockSpec(memory_space=pltpu.MemorySpace.VMEM)] * 3,
        out_specs=pl.BlockSpec(memory_space=pltpu.MemorySpace.VMEM),
    )(bat, w_stack, b_stack)

    return out_p[:B, :F].reshape(B, 1, F)


def decoder_attn_ref(X, hidden_seq, p):
    """Pure-JAX reference of DecoderAttn.init_hidden + forward."""
    B, L, F = X.shape
    H = p["w_ih"].shape[0]
    keys = hidden_seq
    proj_keys = keys @ p["w_k"].T + p["b_k"]                   # (B, S, H)
    h0 = keys[:, -1, :]                                        # (B, H)

    def step(h, x_t):
        h_new = jnp.tanh(x_t @ p["w_ih"].T + h @ p["w_hh"].T
                         + p["b_ih"] + p["b_hh"])
        return h_new, None

    query, _ = lax.scan(step, h0, jnp.transpose(X, (1, 0, 2)))  # (B, H)

    pq = query @ p["w_q"].T + p["b_q"]
    scores = jnp.einsum("bh,bsh->bs", pq, proj_keys) / jnp.sqrt(jnp.float32(H))
    alphas = jax.nn.softmax(scores, axis=-1)
    context = jnp.einsum("bs,bsh->bh", alphas, keys)            # values = keys
    concat = jnp.concatenate([context, query], axis=-1)
    out = concat @ p["w_r"].T + p["b_r"]
    return out.reshape(B, 1, F)


def get_params():
    f = jnp.float32
    return dict(
        # nn.RNN (basic_rnn) fixed parameters
        w_ih=jnp.array([[-0.1802, -0.3691], [-0.0514, 0.4502]], f),
        w_hh=jnp.array([[0.3566, -0.3189], [0.1933, 0.2683]], f),
        b_ih=jnp.array([-0.1258, -0.1091], f),
        b_hh=jnp.array([-0.3417, -0.5897], f),
        # Attention query / key projections (value projection declared but unused)
        w_q=jnp.array([[0.0798, 0.4151], [-0.0994, 0.1561]], f),
        b_q=jnp.array([-0.2548, 0.3911], f),
        w_k=jnp.array([[-0.3068, -0.48], [-0.4578, -0.1488]], f),
        b_k=jnp.array([0.3407, 0.4099], f),
        # regression head nn.Linear(2*hidden, n_features)
        w_r=jnp.array([[-0.3285, -0.3166, -0.4496, 0.2151],
                       [-0.1001, 0.0352, -0.203, -0.1448]], f),
        b_r=jnp.array([-0.0187, 0.2951], f),
    )


if __name__ == "__main__":
    params = get_params()

    # batch must be 16 (Attention.forward hardcodes .view(16, 1, 2));
    # decoder input is a single step (B, 1, n_features=2), encoder provides
    # S=2 hidden states of dim H=2 per batch element.
    B, L, F, S, H = 16, 1, 2, 2, 2
    key = jax.random.PRNGKey(0)
    k1, k2 = jax.random.split(key)
    X = jax.random.normal(k1, (B, L, F), dtype=jnp.float32)
    # encoder hidden states are tanh outputs -> bounded in (-1, 1)
    hidden_seq = jnp.tanh(jax.random.normal(k2, (B, S, H), dtype=jnp.float32))

    out = decoder_attn_forward(X, hidden_seq, params)
    out = jax.block_until_ready(out)

    ref = decoder_attn_ref(X, hidden_seq, params)
    assert out.shape == (B, 1, F), out.shape
    assert jnp.max(jnp.abs(out - ref)) < 1e-5, "mismatch vs reference"

    print("KERNEL_OK")
</pallas_src>

<mosaic_0001>
module attributes {stable_mosaic.version = 11 : i64} {
  func.func @_decoder_attn_kernel(%arg0: memref<6x16x128xf32, #tpu.memory_space<vmem>>, %arg1: memref<4x128x128xf32, #tpu.memory_space<vmem>>, %arg2: memref<2x1x128xf32, #tpu.memory_space<vmem>>, %arg3: memref<16x128xf32, #tpu.memory_space<vmem>>) attributes {dimension_semantics = [], scalar_prefetch = 0 : i64, scratch_operands = 0 : i64, tpu.core_type = #tpu.core_type<tc>} {
    %c0 = arith.constant 0 : index
    %c0_0 = arith.constant 0 : index
    %c0_1 = arith.constant 0 : index
    %0 = vector.load %arg1[%c0, %c0_0, %c0_1] : memref<4x128x128xf32, #tpu.memory_space<vmem>>, vector<1x128x128xf32>
    %1 = vector.shape_cast %0 : vector<1x128x128xf32> to vector<128x128xf32>
    %c0_2 = arith.constant 0 : index
    %c0_3 = arith.constant 0 : index
    %c0_4 = arith.constant 0 : index
    %2 = vector.load %arg0[%c0_2, %c0_3, %c0_4] : memref<6x16x128xf32, #tpu.memory_space<vmem>>, vector<1x16x128xf32>
    %3 = vector.shape_cast %2 : vector<1x16x128xf32> to vector<16x128xf32>
    %c1 = arith.constant 1 : index
    %c0_5 = arith.constant 0 : index
    %c0_6 = arith.constant 0 : index
    %4 = vector.load %arg0[%c1, %c0_5, %c0_6] : memref<6x16x128xf32, #tpu.memory_space<vmem>>, vector<1x16x128xf32>
    %5 = vector.shape_cast %4 : vector<1x16x128xf32> to vector<16x128xf32>
    %cst = arith.constant dense<0.000000e+00> : vector<16x128xf32>
    %6 = tpu.matmul %3, %1, %cst {dimension_numbers = #tpu.dot_dimension_numbers<[1], [0], [0], [1], [0, 0, 1, 1], [], []>} : vector<16x128xf32>, vector<128x128xf32>, vector<16x128xf32> -> vector<16x128xf32>
    %7 = arith.addf %5, %6 : vector<16x128xf32>
    %8 = math.tanh %7 : vector<16x128xf32>
    %c1_7 = arith.constant 1 : index
    %c0_8 = arith.constant 0 : index
    %c0_9 = arith.constant 0 : index
    %9 = vector.load %arg1[%c1_7, %c0_8, %c0_9] : memref<4x128x128xf32, #tpu.memory_space<vmem>>, vector<1x128x128xf32>
    %10 = vector.shape_cast %9 : vector<1x128x128xf32> to vector<128x128xf32>
    %cst_10 = arith.constant dense<0.000000e+00> : vector<16x128xf32>
    %11 = tpu.matmul %8, %10, %cst_10 {dimension_numbers = #tpu.dot_dimension_numbers<[1], [0], [0], [1], [0, 0, 1, 1], [], []>} : vector<16x128xf32>, vector<128x128xf32>, vector<16x128xf32> -> vector<16x128xf32>
    %c0_11 = arith.constant 0 : index
    %c0_12 = arith.constant 0 : index
    %c0_13 = arith.constant 0 : index
    %12 = vector.load %arg2[%c0_11, %c0_12, %c0_13] : memref<2x1x128xf32, #tpu.memory_space<vmem>>, vector<1x1x128xf32>
    %13 = vector.shape_cast %12 : vector<1x1x128xf32> to vector<1x128xf32>
    %14 = vector.broadcast %13 : vector<1x128xf32> to vector<16x128xf32>
    %15 = arith.addf %11, %14 : vector<16x128xf32>
    %c2 = arith.constant 2 : index
    %c0_14 = arith.constant 0 : index
    %c0_15 = arith.constant 0 : index
    %16 = vector.load %arg0[%c2, %c0_14, %c0_15] : memref<6x16x128xf32, #tpu.memory_space<vmem>>, vector<1x16x128xf32>
    %17 = vector.shape_cast %16 : vector<1x16x128xf32> to vector<16x128xf32>
    %18 = arith.mulf %15, %17 : vector<16x128xf32>
    %cst_16 = arith.constant dense<0.000000e+00> : vector<16xf32>
    %19 = vector.multi_reduction <add>, %18, %cst_16 [1] : vector<16x128xf32> to vector<16xf32>
    %20 = vector.shape_cast %19 : vector<16xf32> to vector<16x1xf32>
    %c3 = arith.constant 3 : index
    %c0_17 = arith.constant 0 : index
    %c0_18 = arith.constant 0 : index
    %21 = vector.load %arg0[%c3, %c0_17, %c0_18] : memref<6x16x128xf32, #tpu.memory_space<vmem>>, vector<1x16x128xf32>
    %22 = vector.shape_cast %21 : vector<1x16x128xf32> to vector<16x128xf32>
    %23 = arith.mulf %15, %22 : vector<16x128xf32>
    %cst_19 = arith.constant dense<0.000000e+00> : vector<16xf32>
    %24 = vector.multi_reduction <add>, %23, %cst_19 [1] : vector<16x128xf32> to vector<16xf32>
    %25 = vector.shape_cast %24 : vector<16xf32> to vector<16x1xf32>
    %26 = arith.maximumf %20, %25 : vector<16x1xf32>
    %27 = arith.subf %20, %26 : vector<16x1xf32>
    %28 = math.exp %27 : vector<16x1xf32>
    %29 = arith.subf %25, %26 : vector<16x1xf32>
    %30 = math.exp %29 : vector<16x1xf32>
    %31 = arith.addf %28, %30 : vector<16x1xf32>
    %cst_20 = arith.constant 1.000000e+00 : f32
    %32 = vector.broadcast %cst_20 : f32 to vector<16x1xf32>
    %33 = arith.divf %32, %31 : vector<16x1xf32>
    %34 = arith.mulf %28, %33 : vector<16x1xf32>
    %c4 = arith.constant 4 : index
    %c0_21 = arith.constant 0 : index
    %c0_22 = arith.constant 0 : index
    %35 = vector.load %arg0[%c4, %c0_21, %c0_22] : memref<6x16x128xf32, #tpu.memory_space<vmem>>, vector<1x16x128xf32>
    %36 = vector.shape_cast %35 : vector<1x16x128xf32> to vector<16x128xf32>
    %37 = vector.broadcast %34 : vector<16x1xf32> to vector<16x128xf32>
    %38 = arith.mulf %37, %36 : vector<16x128xf32>
    %39 = arith.mulf %30, %33 : vector<16x1xf32>
    %c5 = arith.constant 5 : index
    %c0_23 = arith.constant 0 : index
    %c0_24 = arith.constant 0 : index
    %40 = vector.load %arg0[%c5, %c0_23, %c0_24] : memref<6x16x128xf32, #tpu.memory_space<vmem>>, vector<1x16x128xf32>
    %41 = vector.shape_cast %40 : vector<1x16x128xf32> to vector<16x128xf32>
    %42 = vector.broadcast %39 : vector<16x1xf32> to vector<16x128xf32>
    %43 = arith.mulf %42, %41 : vector<16x128xf32>
    %44 = arith.addf %38, %43 : vector<16x128xf32>
    %c2_25 = arith.constant 2 : index
    %c0_26 = arith.constant 0 : index
    %c0_27 = arith.constant 0 : index
    %45 = vector.load %arg1[%c2_25, %c0_26, %c0_27] : memref<4x128x128xf32, #tpu.memory_space<vmem>>, vector<1x128x128xf32>
    %46 = vector.shape_cast %45 : vector<1x128x128xf32> to vector<128x128xf32>
    %cst_28 = arith.constant dense<0.000000e+00> : vector<16x128xf32>
    %47 = tpu.matmul %44, %46, %cst_28 {dimension_numbers = #tpu.dot_dimension_numbers<[1], [0], [0], [1], [0, 0, 1, 1], [], []>} : vector<16x128xf32>, vector<128x128xf32>, vector<16x128xf32> -> vector<16x128xf32>
    %c3_29 = arith.constant 3 : index
    %c0_30 = arith.constant 0 : index
    %c0_31 = arith.constant 0 : index
    %48 = vector.load %arg1[%c3_29, %c0_30, %c0_31] : memref<4x128x128xf32, #tpu.memory_space<vmem>>, vector<1x128x128xf32>
    %49 = vector.shape_cast %48 : vector<1x128x128xf32> to vector<128x128xf32>
    %cst_32 = arith.constant dense<0.000000e+00> : vector<16x128xf32>
    %50 = tpu.matmul %8, %49, %cst_32 {dimension_numbers = #tpu.dot_dimension_numbers<[1], [0], [0], [1], [0, 0, 1, 1], [], []>} : vector<16x128xf32>, vector<128x128xf32>, vector<16x128xf32> -> vector<16x128xf32>
    %51 = arith.addf %47, %50 : vector<16x128xf32>
    %c1_33 = arith.constant 1 : index
    %c0_34 = arith.constant 0 : index
    %c0_35 = arith.constant 0 : index
    %52 = vector.load %arg2[%c1_33, %c0_34, %c0_35] : memref<2x1x128xf32, #tpu.memory_space<vmem>>, vector<1x1x128xf32>
    %53 = vector.shape_cast %52 : vector<1x1x128xf32> to vector<1x128xf32>
    %54 = vector.broadcast %53 : vector<1x128xf32> to vector<16x128xf32>
    %55 = arith.addf %51, %54 : vector<16x128xf32>
    %c0_36 = arith.constant 0 : index
    %c0_37 = arith.constant 0 : index
    %56 = vector.load %arg3[%c0_36, %c0_37] : memref<16x128xf32, #tpu.memory_space<vmem>>, vector<16x128xf32>
    tpu.vector_store %arg3[%c0_36, %c0_37], %55 {strides = array<i32>} : memref<16x128xf32, #tpu.memory_space<vmem>>, vector<16x128xf32>,
    return
  }
}

</mosaic_0001>

<llo_original>
// kernel: decoder_attn_forward.1
$region0: #{decoder_attn_forward.1}
  #allocation0 [shape = 'u32[]', space=smem, size = 0x4, offset = 0x4, fixed_abs, tag = 'smem constant byte address 0x4 - core index']
  #allocation1 [shape = 'u32[144,128]{1,0:T(1,128)}', space=vmem, size = 0x12000, scoped, tag = 'internal scratch']
  %s0 = inlined_call_operand.vmem [shape: f32[6,16,128], index: 0, kind: input, shape index: {}]
  %s1 = inlined_call_operand.vmem [shape: f32[4,128,128], index: 1, kind: input, shape index: {}]
  %s2 = inlined_call_operand.vmem [shape: f32[2,1,128], index: 2, kind: input, shape index: {}]
  %s3 = inlined_call_operand.vmem [shape: f32[16,128], index: 3, kind: output, shape index: {}]
  %s4 = sld [smem:[#allocation0]]
  $region22: #{decoder_attn_forward.1} parent=0
    _
  %s6 = ssub.s32 1, %s4
  %s7 = scalar_select 0, %s6, %s4
  // Predicated region
  $region2: #{decoder_attn_forward.1} parent=0 // pred_check
    _
  $region3: #{decoder_attn_forward.1} parent=0 // pred_check_branch
    %9 = sbr.rel (0) target = $region5
  $region4: #{decoder_attn_forward.1} parent=0 // pred_region
    _
  $region5: #{decoder_attn_forward.1} parent=0 // pred_fallthru
    _
  // Predicated region
  $region6: #{decoder_attn_forward.1} parent=0 // pred_check
    _
  $region7: #{decoder_attn_forward.1} parent=0 // pred_check_branch
    %11 = sbr.rel (0) target = $region9
  $region8: #{decoder_attn_forward.1} parent=0 // pred_region
    _
  $region9: #{decoder_attn_forward.1} parent=0 // pred_fallthru
    _
  // Predicated region
  $region10: #{decoder_attn_forward.1} parent=0 // pred_check
    _
  $region11: #{decoder_attn_forward.1} parent=0 // pred_check_branch
    %13 = sbr.rel (0) target = $region13
  $region12: #{decoder_attn_forward.1} parent=0 // pred_region
    _
  $region13: #{decoder_attn_forward.1} parent=0 // pred_fallthru
    _
  %v14 = vld [vmem:[%s1] sm:$0xff]
  %v15 = vld [vmem:[%s1 + $0x8] sm:$0xff]
  %v16 = vld [vmem:[%s1 + $0x10] sm:$0xff]
  %v17 = vld [vmem:[%s1 + $0x18] sm:$0xff]
  %v18 = vld [vmem:[%s1 + $0x20] sm:$0xff]
  %v19 = vld [vmem:[%s1 + $0x28] sm:$0xff]
  %v20 = vld [vmem:[%s1 + $0x30] sm:$0xff]
  %v21 = vld [vmem:[%s1 + $0x38] sm:$0xff]
  %v22 = vld [vmem:[%s1 + $0x40] sm:$0xff]
  %v23 = vld [vmem:[%s1 + $0x48] sm:$0xff]
  %v24 = vld [vmem:[%s1 + $0x50] sm:$0xff]
  %v25 = vld [vmem:[%s1 + $0x58] sm:$0xff]
  %v26 = vld [vmem:[%s1 + $0x60] sm:$0xff]
  %v27 = vld [vmem:[%s1 + $0x68] sm:$0xff]
  %v28 = vld [vmem:[%s1 + $0x70] sm:$0xff]
  %v29 = vld [vmem:[%s1 + $0x78] sm:$0xff]
  %v30 = vld [vmem:[%s0] sm:$0xff]
  %v31 = vld [vmem:[%s0 + $0x8] sm:$0xff]
  %s32 = scalar_lea.vmem %s0, 16
  %v33 = vld [vmem:[%s32] sm:$0xff]
  %v34 = vld [vmem:[%s32 + $0x8] sm:$0xff]
  %35 = vmatprep.subr.mxu0 0.0
  %36 = vmatpush1.msra.mxu0 %v14
  %37 = vmatprep.subr.mxu0 0.0
  %38 = vmatpush1.msra.mxu0 %v15
  %39 = vmatprep.subr.mxu0 0.0
  %40 = vmatpush1.msra.mxu0 %v16
  %41 = vmatprep.subr.mxu0 0.0
  %42 = vmatpush1.msra.mxu0 %v17
  %43 = vmatprep.subr.mxu0 0.0
  %44 = vmatpush1.msra.mxu0 %v18
  %45 = vmatprep.subr.mxu0 0.0
  %46 = vmatpush1.msra.mxu0 %v19
  %47 = vmatprep.subr.mxu0 0.0
  %48 = vmatpush1.msra.mxu0 %v20
  %49 = vmatprep.subr.mxu0 0.0
  %50 = vmatpush1.msra.mxu0 %v21
  %51 = vmatprep.subr.mxu0 0.0
  %52 = vmatpush1.msra.mxu0 %v22
  %53 = vmatprep.subr.mxu0 0.0
  %54 = vmatpush1.msra.mxu0 %v23
  %55 = vmatprep.subr.mxu0 0.0
  %56 = vmatpush1.msra.mxu0 %v24
  %57 = vmatprep.subr.mxu0 0.0
  %58 = vmatpush1.msra.mxu0 %v25
  %59 = vmatprep.subr.mxu0 0.0
  %60 = vmatpush1.msra.mxu0 %v26
  %61 = vmatprep.subr.mxu0 0.0
  %62 = vmatpush1.msra.mxu0 %v27
  %63 = vmatprep.subr.mxu0 0.0
  %64 = vmatpush1.msra.mxu0 %v28
  %65 = vmatprep.subr.mxu0 0.0
  %66 = vmatpush1.msra.mxu0 %v29
  %67 = vmatprep.subr.mxu0 0.0
  %68 = vmatpush1.msra.mxu0 0.0
  %69 = vmatprep.subr.mxu0 0.0
  %70 = vmatpush1.msra.mxu0 0.0
  %71 = vmatprep.subr.mxu0 0.0
  %72 = vmatpush1.msra.mxu0 0.0
  %73 = vmatprep.subr.mxu0 0.0
  %74 = vmatpush1.msra.mxu0 0.0
  %75 = vmatprep.subr.mxu0 0.0
  %76 = vmatpush1.msra.mxu0 0.0
  %77 = vmatprep.subr.mxu0 0.0
  %78 = vmatpush1.msra.mxu0 0.0
  %79 = vmatprep.subr.mxu0 0.0
  %80 = vmatpush1.msra.mxu0 0.0
  %81 = vmatprep.subr.mxu0 0.0
  %82 = vmatpush1.msra.mxu0 0.0
  %83 = vmatprep.subr.mxu0 0.0
  %84 = vmatpush1.msra.mxu0 0.0
  %85 = vmatprep.subr.mxu0 0.0
  %86 = vmatpush1.msra.mxu0 0.0
  %87 = vmatprep.subr.mxu0 0.0
  %88 = vmatpush1.msra.mxu0 0.0
  %89 = vmatprep.subr.mxu0 0.0
  %90 = vmatpush1.msra.mxu0 0.0
  %91 = vmatprep.subr.mxu0 0.0
  %92 = vmatpush1.msra.mxu0 0.0
  %93 = vmatprep.subr.mxu0 0.0
  %94 = vmatpush1.msra.mxu0 0.0
  %95 = vmatprep.subr.mxu0 0.0
  %96 = vmatpush1.msra.mxu0 0.0
  %97 = vmatprep.subr.mxu0 0.0
  %98 = vmatpush1.msra.mxu0 0.0
  %99 = vmatprep.mubr.f32.mxu0 0.0
  %100 = vmatmul.mubr.f32.gmra.mrb[0].mxu0 %v30
  %v101 = vpop.f32.mrb[0].mxu0
  %v102 = vadd.f32 0.0, %v101
  %v103 = vpop.f32.mrb[0].mxu0
  %104 = vmatprep.mubr.f32.mxu0 0.0
  %105 = vmatmul.mubr.f32.gmra.mrb[0].mxu0 %v31
  %v106 = vpop.f32.mrb[0].mxu0
  %v107 = vadd.f32 0.0, %v106
  %v108 = vpop.f32.mrb[0].mxu0
  %109 = vdwg.mxu0
  %v110 = vadd.f32 %v33, %v102
  %v111 = vadd.f32 %v34, %v107
  %v112 = vtanh.pop %v110
  %v113 = vtanh.pop %v111
  %s114 = scalar_lea.vmem %s1, 128
  %v115 = vld [vmem:[%s114] sm:$0xff]
  %v116 = vld [vmem:[%s114 + $0x8] sm:$0xff]
  %v117 = vld [vmem:[%s114 + $0x10] sm:$0xff]
  %v118 = vld [vmem:[%s114 + $0x18] sm:$0xff]
  %v119 = vld [vmem:[%s114 + $0x20] sm:$0xff]
  %v120 = vld [vmem:[%s114 + $0x28] sm:$0xff]
  %v121 = vld [vmem:[%s114 + $0x30] sm:$0xff]
  %v122 = vld [vmem:[%s114 + $0x38] sm:$0xff]
  %v123 = vld [vmem:[%s114 + $0x40] sm:$0xff]
  %v124 = vld [vmem:[%s114 + $0x48] sm:$0xff]
  %v125 = vld [vmem:[%s114 + $0x50] sm:$0xff]
  %v126 = vld [vmem:[%s114 + $0x58] sm:$0xff]
  %v127 = vld [vmem:[%s114 + $0x60] sm:$0xff]
  %v128 = vld [vmem:[%s114 + $0x68] sm:$0xff]
  %v129 = vld [vmem:[%s114 + $0x70] sm:$0xff]
  %v130 = vld [vmem:[%s114 + $0x78] sm:$0xff]
  %v131 = vld [vmem:[%s2] sm:$0x1]
  %v133 = vlaneseq
  %v134 = vshrl.u32 %v133, 7
  %v135 = vsub.s32 0, %v134
  %v136 = vrot.slane %v131, %v135
  %138 = vmatprep.subr.mxu0 0.0
  %139 = vmatpush1.msra.mxu0 %v115
  %140 = vmatprep.subr.mxu0 0.0
  %141 = vmatpush1.msra.mxu0 %v116
  %142 = vmatprep.subr.mxu0 0.0
  %143 = vmatpush1.msra.mxu0 %v117
  %144 = vmatprep.subr.mxu0 0.0
  %145 = vmatpush1.msra.mxu0 %v118
  %146 = vmatprep.subr.mxu0 0.0
  %147 = vmatpush1.msra.mxu0 %v119
  %148 = vmatprep.subr.mxu0 0.0
  %149 = vmatpush1.msra.mxu0 %v120
  %150 = vmatprep.subr.mxu0 0.0
  %151 = vmatpush1.msra.mxu0 %v121
  %152 = vmatprep.subr.mxu0 0.0
  %153 = vmatpush1.msra.mxu0 %v122
  %154 = vmatprep.subr.mxu0 0.0
  %155 = vmatpush1.msra.mxu0 %v123
  %156 = vmatprep.subr.mxu0 0.0
  %157 = vmatpush1.msra.mxu0 %v124
  %158 = vmatprep.subr.mxu0 0.0
  %159 = vmatpush1.msra.mxu0 %v125
  %160 = vmatprep.subr.mxu0 0.0
  %161 = vmatpush1.msra.mxu0 %v126
  %162 = vmatprep.subr.mxu0 0.0
  %163 = vmatpush1.msra.mxu0 %v127
  %164 = vmatprep.subr.mxu0 0.0
  %165 = vmatpush1.msra.mxu0 %v128
  %166 = vmatprep.subr.mxu0 0.0
  %167 = vmatpush1.msra.mxu0 %v129
  %168 = vmatprep.subr.mxu0 0.0
  %169 = vmatpush1.msra.mxu0 %v130
  %170 = vmatprep.subr.mxu0 0.0
  %171 = vmatpush1.msra.mxu0 0.0
  %172 = vmatprep.subr.mxu0 0.0
  %173 = vmatpush1.msra.mxu0 0.0
  %174 = vmatprep.subr.mxu0 0.0
  %175 = vmatpush1.msra.mxu0 0.0
  %176 = vmatprep.subr.mxu0 0.0
  %177 = vmatpush1.msra.mxu0 0.0
  %178 = vmatprep.subr.mxu0 0.0
  %179 = vmatpush1.msra.mxu0 0.0
  %180 = vmatprep.subr.mxu0 0.0
  %181 = vmatpush1.msra.mxu0 0.0
  %182 = vmatprep.subr.mxu0 0.0
  %183 = vmatpush1.msra.mxu0 0.0
  %184 = vmatprep.subr.mxu0 0.0
  %185 = vmatpush1.msra.mxu0 0.0
  %186 = vmatprep.subr.mxu0 0.0
  %187 = vmatpush1.msra.mxu0 0.0
  %188 = vmatprep.subr.mxu0 0.0
  %189 = vmatpush1.msra.mxu0 0.0
  %190 = vmatprep.subr.mxu0 0.0
  %191 = vmatpush1.msra.mxu0 0.0
  %192 = vmatprep.subr.mxu0 0.0
  %193 = vmatpush1.msra.mxu0 0.0
  %194 = vmatprep.subr.mxu0 0.0
  %195 = vmatpush1.msra.mxu0 0.0
  %196 = vmatprep.subr.mxu0 0.0
  %197 = vmatpush1.msra.mxu0 0.0
  %198 = vmatprep.subr.mxu0 0.0
  %199 = vmatpush1.msra.mxu0 0.0
  %200 = vmatprep.subr.mxu0 0.0
  %201 = vmatpush1.msra.mxu0 0.0
  %202 = vmatprep.mubr.f32.mxu0 0.0
  %203 = vmatmul.mubr.f32.gmra.mrb[0].mxu0 %v112
  %v204 = vpop.f32.mrb[0].mxu0
  %v205 = vadd.f32 %v136, %v204
  %v206 = vpop.f32.mrb[0].mxu0
  %207 = vmatprep.mubr.f32.mxu0 0.0
  %208 = vmatmul.mubr.f32.gmra.mrb[0].mxu0 %v113
  %v209 = vpop.f32.mrb[0].mxu0
  %v210 = vadd.f32 %v136, %v209
  %v211 = vpop.f32.mrb[0].mxu0
  %212 = vdwg.mxu0
  %s213 = scalar_lea.vmem %s0, 32
  %v214 = vld [vmem:[%s213] sm:$0xff]
  %v215 = vld [vmem:[%s213 + $0x8] sm:$0xff]
  %v216 = vmul.f32 %v205, %v214
  %v217 = vmul.f32 %v210, %v215
  %218 = vadd.xlane.f32.xlu0 %v216
  %v219 = vpop.xlane.xlu0 %218
  %220 = vadd.xlane.f32.xlu0 %v217
  %v221 = vpop.xlane.xlu0 %220
  %s222 = scalar_lea.vmem %s0, 48
  %v223 = vld [vmem:[%s222] sm:$0xff]
  %v224 = vld [vmem:[%s222 + $0x8] sm:$0xff]
  %v225 = vmul.f32 %v205, %v223
  %v226 = vmul.f32 %v210, %v224
  %227 = vadd.xlane.f32.xlu0 %v225
  %v228 = vpop.xlane.xlu0 %227
  %229 = vadd.xlane.f32.xlu0 %v226
  %v230 = vpop.xlane.xlu0 %229
  %v231 = vmax.f32 %v219, %v228
  %v232 = vmax.f32 %v221, %v230
  %v233 = vsub.f32 %v219, %v231
  %v234 = vsub.f32 %v221, %v232
  %v235 = vmul.f32 %v233, 1.442695
  %v236 = vpow.pop %v235
  %v237 = vmul.f32 %v234, 1.442695
  %v238 = vpow.pop %v237
  %v239 = vsub.f32 %v228, %v231
  %v240 = vsub.f32 %v230, %v232
  %v241 = vmul.f32 %v239, 1.442695
  %v242 = vpow.pop %v241
  %v243 = vmul.f32 %v240, 1.442695
  %v244 = vpow.pop %v243
  %v245 = vadd.f32 %v236, %v242
  %v246 = vadd.f32 %v238, %v244
  %v247 = vrcp.pop %v245
  %v248 = vmul.f32 1.0, %v247
  %v249 = vrcp.pop %v246
  %v250 = vmul.f32 1.0, %v249
  %v251 = vmul.f32 %v236, %v248
  %v252 = vmul.f32 %v238, %v250
  %s253 = scalar_lea.vmem %s0, 64
  %v254 = vld [vmem:[%s253] sm:$0xff]
  %v255 = vld [vmem:[%s253 + $0x8] sm:$0xff]
  %v256 = vmul.f32 %v251, %v254
  %v257 = vmul.f32 %v252, %v255
  %v258 = vmul.f32 %v242, %v248
  %v259 = vmul.f32 %v244, %v250
  %s260 = scalar_lea.vmem %s0, 80
  %v261 = vld [vmem:[%s260] sm:$0xff]
  %v262 = vld [vmem:[%s260 + $0x8] sm:$0xff]
  %v263 = vmul.f32 %v258, %v261
  %v264 = vmul.f32 %v259, %v262
  %v265 = vadd.f32 %v256, %v263
  %v266 = vadd.f32 %v257, %v264
  %s267 = scalar_lea.vmem %s1, 256
  %v268 = vld [vmem:[%s267] sm:$0xff]
  %v269 = vld [vmem:[%s267 + $0x8] sm:$0xff]
  %v270 = vld [vmem:[%s267 + $0x10] sm:$0xff]
  %v271 = vld [vmem:[%s267 + $0x18] sm:$0xff]
  %v272 = vld [vmem:[%s267 + $0x20] sm:$0xff]
  %v273 = vld [vmem:[%s267 + $0x28] sm:$0xff]
  %v274 = vld [vmem:[%s267 + $0x30] sm:$0xff]
  %v275 = vld [vmem:[%s267 + $0x38] sm:$0xff]
  %v276 = vld [vmem:[%s267 + $0x40] sm:$0xff]
  %v277 = vld [vmem:[%s267 + $0x48] sm:$0xff]
  %v278 = vld [vmem:[%s267 + $0x50] sm:$0xff]
  %v279 = vld [vmem:[%s267 + $0x58] sm:$0xff]
  %v280 = vld [vmem:[%s267 + $0x60] sm:$0xff]
  %v281 = vld [vmem:[%s267 + $0x68] sm:$0xff]
  %v282 = vld [vmem:[%s267 + $0x70] sm:$0xff]
  %v283 = vld [vmem:[%s267 + $0x78] sm:$0xff]
  %s284 = scalar_lea.vmem %s1, 384
  %v285 = vld [vmem:[%s284] sm:$0xff]
  %v286 = vld [vmem:[%s284 + $0x8] sm:$0xff]
  %v287 = vld [vmem:[%s284 + $0x10] sm:$0xff]
  %v288 = vld [vmem:[%s284 + $0x18] sm:$0xff]
  %v289 = vld [vmem:[%s284 + $0x20] sm:$0xff]
  %v290 = vld [vmem:[%s284 + $0x28] sm:$0xff]
  %v291 = vld [vmem:[%s284 + $0x30] sm:$0xff]
  %v292 = vld [vmem:[%s284 + $0x38] sm:$0xff]
  %v293 = vld [vmem:[%s284 + $0x40] sm:$0xff]
  %v294 = vld [vmem:[%s284 + $0x48] sm:$0xff]
  %v295 = vld [vmem:[%s284 + $0x50] sm:$0xff]
  %v296 = vld [vmem:[%s284 + $0x58] sm:$0xff]
  %v297 = vld [vmem:[%s284 + $0x60] sm:$0xff]
  %v298 = vld [vmem:[%s284 + $0x68] sm:$0xff]
  %v299 = vld [vmem:[%s284 + $0x70] sm:$0xff]
  %v300 = vld [vmem:[%s284 + $0x78] sm:$0xff]
  %301 = vmatprep.subr.mxu0 0.0
  %302 = vmatpush1.msra.mxu0 %v285
  %303 = vmatprep.subr.mxu0 0.0
  %304 = vmatpush1.msra.mxu0 %v286
  %305 = vmatprep.subr.mxu0 0.0
  %306 = vmatpush1.msra.mxu0 %v287
  %307 = vmatprep.subr.mxu0 0.0
  %308 = vmatpush1.msra.mxu0 %v288
  %309 = vmatprep.subr.mxu0 0.0
  %310 = vmatpush1.msra.mxu0 %v289
  %311 = vmatprep.subr.mxu0 0.0
  %312 = vmatpush1.msra.mxu0 %v290
  %313 = vmatprep.subr.mxu0 0.0
  %314 = vmatpush1.msra.mxu0 %v291
  %315 = vmatprep.subr.mxu0 0.0
  %316 = vmatpush1.msra.mxu0 %v292
  %317 = vmatprep.subr.mxu0 0.0
  %318 = vmatpush1.msra.mxu0 %v293
  %319 = vmatprep.subr.mxu0 0.0
  %320 = vmatpush1.msra.mxu0 %v294
  %321 = vmatprep.subr.mxu0 0.0
  %322 = vmatpush1.msra.mxu0 %v295
  %323 = vmatprep.subr.mxu0 0.0
  %324 = vmatpush1.msra.mxu0 %v296
  %325 = vmatprep.subr.mxu0 0.0
  %326 = vmatpush1.msra.mxu0 %v297
  %327 = vmatprep.subr.mxu0 0.0
  %328 = vmatpush1.msra.mxu0 %v298
  %329 = vmatprep.subr.mxu0 0.0
  %330 = vmatpush1.msra.mxu0 %v299
  %331 = vmatprep.subr.mxu0 0.0
  %332 = vmatpush1.msra.mxu0 %v300
  %333 = vmatprep.subr.mxu0 0.0
  %334 = vmatpush1.msra.mxu0 0.0
  %335 = vmatprep.subr.mxu0 0.0
  %336 = vmatpush1.msra.mxu0 0.0
  %337 = vmatprep.subr.mxu0 0.0
  %338 = vmatpush1.msra.mxu0 0.0
  %339 = vmatprep.subr.mxu0 0.0
  %340 = vmatpush1.msra.mxu0 0.0
  %341 = vmatprep.subr.mxu0 0.0
  %342 = vmatpush1.msra.mxu0 0.0
  %343 = vmatprep.subr.mxu0 0.0
  %344 = vmatpush1.msra.mxu0 0.0
  %345 = vmatprep.subr.mxu0 0.0
  %346 = vmatpush1.msra.mxu0 0.0
  %347 = vmatprep.subr.mxu0 0.0
  %348 = vmatpush1.msra.mxu0 0.0
  %349 = vmatprep.subr.mxu0 0.0
  %350 = vmatpush1.msra.mxu0 0.0
  %351 = vmatprep.subr.mxu0 0.0
  %352 = vmatpush1.msra.mxu0 0.0
  %353 = vmatprep.subr.mxu0 0.0
  %354 = vmatpush1.msra.mxu0 0.0
  %355 = vmatprep.subr.mxu0 0.0
  %356 = vmatpush1.msra.mxu0 0.0
  %357 = vmatprep.subr.mxu0 0.0
  %358 = vmatpush1.msra.mxu0 0.0
  %359 = vmatprep.subr.mxu0 0.0
  %360 = vmatpush1.msra.mxu0 0.0
  %361 = vmatprep.subr.mxu0 0.0
  %362 = vmatpush1.msra.mxu0 0.0
  %363 = vmatprep.subr.mxu0 0.0
  %364 = vmatpush1.msra.mxu0 0.0
  %365 = vmatprep.mubr.f32.mxu0 0.0
  %366 = vmatmul.mubr.f32.gmra.mrb[0].mxu0 %v112
  %v367 = vpop.f32.mrb[0].mxu0
  %v368 = vadd.f32 0.0, %v367
  %v369 = vpop.f32.mrb[0].mxu0
  %370 = vmatprep.mubr.f32.mxu0 0.0
  %371 = vmatmul.mubr.f32.gmra.mrb[0].mxu0 %v113
  %v372 = vpop.f32.mrb[0].mxu0
  %v373 = vadd.f32 0.0, %v372
  %v374 = vpop.f32.mrb[0].mxu0
  %375 = vdwg.mxu0
  %376 = vmatprep.subr.mxu0 0.0
  %377 = vmatpush1.msra.mxu0 %v268
  %378 = vmatprep.subr.mxu0 0.0
  %379 = vmatpush1.msra.mxu0 %v269
  %380 = vmatprep.subr.mxu0 0.0
  %381 = vmatpush1.msra.mxu0 %v270
  %382 = vmatprep.subr.mxu0 0.0
  %383 = vmatpush1.msra.mxu0 %v271
  %384 = vmatprep.subr.mxu0 0.0
  %385 = vmatpush1.msra.mxu0 %v272
  %386 = vmatprep.subr.mxu0 0.0
  %387 = vmatpush1.msra.mxu0 %v273
  %388 = vmatprep.subr.mxu0 0.0
  %389 = vmatpush1.msra.mxu0 %v274
  %390 = vmatprep.subr.mxu0 0.0
  %391 = vmatpush1.msra.mxu0 %v275
  %392 = vmatprep.subr.mxu0 0.0
  %393 = vmatpush1.msra.mxu0 %v276
  %394 = vmatprep.subr.mxu0 0.0
  %395 = vmatpush1.msra.mxu0 %v277
  %396 = vmatprep.subr.mxu0 0.0
  %397 = vmatpush1.msra.mxu0 %v278
  %398 = vmatprep.subr.mxu0 0.0
  %399 = vmatpush1.msra.mxu0 %v279
  %400 = vmatprep.subr.mxu0 0.0
  %401 = vmatpush1.msra.mxu0 %v280
  %402 = vmatprep.subr.mxu0 0.0
  %403 = vmatpush1.msra.mxu0 %v281
  %404 = vmatprep.subr.mxu0 0.0
  %405 = vmatpush1.msra.mxu0 %v282
  %406 = vmatprep.subr.mxu0 0.0
  %407 = vmatpush1.msra.mxu0 %v283
  %408 = vmatprep.subr.mxu0 0.0
  %409 = vmatpush1.msra.mxu0 0.0
  %410 = vmatprep.subr.mxu0 0.0
  %411 = vmatpush1.msra.mxu0 0.0
  %412 = vmatprep.subr.mxu0 0.0
  %413 = vmatpush1.msra.mxu0 0.0
  %414 = vmatprep.subr.mxu0 0.0
  %415 = vmatpush1.msra.mxu0 0.0
  %416 = vmatprep.subr.mxu0 0.0
  %417 = vmatpush1.msra.mxu0 0.0
  %418 = vmatprep.subr.mxu0 0.0
  %419 = vmatpush1.msra.mxu0 0.0
  %420 = vmatprep.subr.mxu0 0.0
  %421 = vmatpush1.msra.mxu0 0.0
  %422 = vmatprep.subr.mxu0 0.0
  %423 = vmatpush1.msra.mxu0 0.0
  %424 = vmatprep.subr.mxu0 0.0
  %425 = vmatpush1.msra.mxu0 0.0
  %426 = vmatprep.subr.mxu0 0.0
  %427 = vmatpush1.msra.mxu0 0.0
  %428 = vmatprep.subr.mxu0 0.0
  %429 = vmatpush1.msra.mxu0 0.0
  %430 = vmatprep.subr.mxu0 0.0
  %431 = vmatpush1.msra.mxu0 0.0
  %432 = vmatprep.subr.mxu0 0.0
  %433 = vmatpush1.msra.mxu0 0.0
  %434 = vmatprep.subr.mxu0 0.0
  %435 = vmatpush1.msra.mxu0 0.0
  %436 = vmatprep.subr.mxu0 0.0
  %437 = vmatpush1.msra.mxu0 0.0
  %438 = vmatprep.subr.mxu0 0.0
  %439 = vmatpush1.msra.mxu0 0.0
  %440 = vmatprep.mubr.f32.mxu0 0.0
  %441 = vmatmul.mubr.f32.gmra.mrb[0].mxu0 %v265
  %v442 = vpop.f32.mrb[0].mxu0
  %v443 = vadd.f32 %v368, %v442
  %v444 = vpop.f32.mrb[0].mxu0
  %445 = vmatprep.mubr.f32.mxu0 0.0
  %446 = vmatmul.mubr.f32.gmra.mrb[0].mxu0 %v266
  %v447 = vpop.f32.mrb[0].mxu0
  %v448 = vadd.f32 %v373, %v447
  %v449 = vpop.f32.mrb[0].mxu0
  %450 = vdwg.mxu0
  %s451 = scalar_lea.vmem %s2, 1
  %v452 = vld [vmem:[%s451] sm:$0x1]
  %v454 = vlaneseq
  %v455 = vshrl.u32 %v454, 7
  %v456 = vsub.s32 0, %v455
  %v457 = vrot.slane %v452, %v456
  %v459 = vadd.f32 %v443, %v457
  %v460 = vadd.f32 %v448, %v457
  %461 = vst [vmem:[%s3] sm:$0xff] %v459
  %462 = vst [vmem:[%s3 + $0x8] sm:$0xff] %v460
  // Predicated region
  $region14: #{decoder_attn_forward.1} parent=0 // pred_check
    _
  $region15: #{decoder_attn_forward.1} parent=0 // pred_check_branch
    %464 = sbr.rel (0) target = $region17
  $region16: #{decoder_attn_forward.1} parent=0 // pred_region
    _
  $region17: #{decoder_attn_forward.1} parent=0 // pred_fallthru
    _
  // Predicated region
  $region18: #{decoder_attn_forward.1} parent=0 // pred_check
    _
  $region19: #{decoder_attn_forward.1} parent=0 // pred_check_branch
    %466 = sbr.rel (0) target = $region21
  $region20: #{decoder_attn_forward.1} parent=0 // pred_region
    _
  $region21: #{decoder_attn_forward.1} parent=0 // pred_fallthru
    _

</llo_original>
